<compile_context>
chip_gen: v7x
topology: tpu7x:2x2x1
jax: 0.10.0
libtpu: 0.0.40
codegen_flags: <defaults>
</compile_context>

<pallas_src>
import math
import jax
import jax.numpy as jnp
from jax import lax
from jax.experimental import pallas as pl
from jax.experimental.pallas import tpu as pltpu

ADJ_SIZE = 40
BN_EPS = 1e-5
LANE = 128

# crop windows of the three CropConvolution branches (hard-coded in the module)
CROPS = ((0, 20), (10, 30), (20, 40))


def block_conv_kernel(x_ref, adj_ref, w_ref, out_ref):
    """Fused BlockConvolution forward.

    x_ref   : (B, N, Fin)  node features
    adj_ref : (B, N, N)    adjacency
    w_ref   : (Fin, Fp)    shared GCN weight, Fout zero-padded to Fp (lane-dense)
    out_ref : (B, N, Fp)   output (padded lanes stay zero)
    """
    B, N, Fin = x_ref.shape
    Fp = w_ref.shape[1]

    x = x_ref[...]
    # Broadcast the shared weight across the batch so every contraction is a plain
    # batched matmul (well-supported Mosaic dot lowering); one-time, tiny.
    w_b = jnp.broadcast_to(w_ref[...][None], (B, Fin, Fp))

    # support = x @ W, shared by all three crops.   (B, N, Fp)
    support = jnp.einsum('bnf,bfo->bno', x, w_b,
                         preferred_element_type=jnp.float32)

    def crop_bn(s, e):
        # adj * crop_mask is an exact [s:e, s:e] block and bmm with it only produces
        # nonzero rows in [s:e); rows outside normalize to exactly 0 under BatchNorm
        # ((0 - 0) * rsqrt(0 + eps) == 0), so only the 20-row slab is computed.
        adj_blk = adj_ref[:, s:e, s:e]            # (B, 20, 20)  loaded straight from VMEM
        sup_blk = support[:, s:e, :]              # (B, 20, Fp)
        y = jnp.einsum('bij,bjo->bio', adj_blk, sup_blk,
                       preferred_element_type=jnp.float32)
        # BatchNorm1d, training mode, gamma=1, beta=0, biased variance over the batch
        # axis; one-pass variance (clamped at 0 against cancellation).
        mean = jnp.mean(y, axis=0, keepdims=True)
        var = jnp.maximum(jnp.mean(y * y, axis=0, keepdims=True) - mean * mean, 0.0)
        return (y - mean) * lax.rsqrt(var + BN_EPS)

    y1 = crop_bn(*CROPS[0])                       # rows  0:20
    y2 = crop_bn(*CROPS[1])                       # rows 10:30
    y3 = crop_bn(*CROPS[2])                       # rows 20:40

    # out_mask (1 on rows 0:10 & 30:40, 0.5 on rows 10:30) folded into the stores.
    out_ref[:, 0:10, :] = y1[:, 0:10, :]
    out_ref[:, 10:20, :] = 0.5 * (y1[:, 10:20, :] + y2[:, 0:10, :])
    out_ref[:, 20:30, :] = 0.5 * (y2[:, 10:20, :] + y3[:, 0:10, :])
    out_ref[:, 30:40, :] = y3[:, 10:20, :]


def block_convolution(x, adj, weight):
    """x: (B, N, Fin), adj: (B, N, N), weight: (Fin, Fout) -> (B, N, Fout)."""
    B, N, Fin = x.shape
    Fout = weight.shape[1]
    assert N == ADJ_SIZE, "crop windows are hard-coded for adj_size == 40"

    # Pad Fout up to a full 128-lane register so every intermediate and the output
    # store are lane-dense (unmasked vst). Padding columns stay exactly zero.
    Fp = ((Fout + LANE - 1) // LANE) * LANE
    w_pad = jnp.zeros((Fin, Fp), jnp.float32).at[:, :Fout].set(weight.astype(jnp.float32))

    vmem = pl.BlockSpec(memory_space=pltpu.MemorySpace.VMEM)
    out = pl.pallas_call(
        block_conv_kernel,
        out_shape=jax.ShapeDtypeStruct((B, N, Fp), jnp.float32),
        in_specs=[vmem, vmem, vmem],
        out_specs=vmem,
    )(x, adj, w_pad)
    return out[:, :, :Fout]


def reference(x, adj, weight):
    """Pure-JAX reference matching the PyTorch module (full masked-adj path)."""
    B, N, _ = x.shape
    Fout = weight.shape[1]

    def crop_mask(s, e):
        return jnp.zeros((N, N), jnp.float32).at[s:e, s:e].set(1.0)

    support = jnp.einsum('bnf,fo->bno', x, weight)
    total = jnp.zeros((B, N, Fout), jnp.float32)
    for (s, e) in CROPS:
        y = jnp.einsum('bnm,bmo->bno', adj * crop_mask(s, e)[None], support)
        mean = y.mean(axis=0, keepdims=True)
        var = ((y - mean) ** 2).mean(axis=0, keepdims=True)
        total = total + (y - mean) / jnp.sqrt(var + BN_EPS)
    out_mask_counts = jnp.ones((N, Fout), jnp.float32).at[10:30, :].set(2.0)
    return total / out_mask_counts[None]


if __name__ == "__main__":
    B, N, Fin, Fout = 2, ADJ_SIZE, 16, 8

    key = jax.random.PRNGKey(0)
    k_x, k_adj, k_w = jax.random.split(key, 3)

    x = jax.random.normal(k_x, (B, N, Fin), dtype=jnp.float32)
    adj = jax.random.uniform(k_adj, (B, N, N), dtype=jnp.float32)

    # reset_parameters(): uniform(-stdv, stdv) with stdv = 1/sqrt(out_features)
    stdv = 1.0 / math.sqrt(Fout)
    weight = jax.random.uniform(k_w, (Fin, Fout), dtype=jnp.float32,
                                minval=-stdv, maxval=stdv)

    out = block_convolution(x, adj, weight)
    out = jax.block_until_ready(out)

    ref = reference(x, adj, weight)
    assert out.shape == (B, N, Fout)
    assert jnp.allclose(out, ref, atol=5e-2, rtol=5e-2), \
        float(jnp.max(jnp.abs(out - ref)))

    print("KERNEL_OK")
</pallas_src>

<mosaic_0001>
module attributes {stable_mosaic.version = 11 : i64} {
  func.func @block_conv_kernel(%arg0: memref<2x40x16xf32, #tpu.memory_space<vmem>>, %arg1: memref<2x40x40xf32, #tpu.memory_space<vmem>>, %arg2: memref<16x128xf32, #tpu.memory_space<vmem>>, %arg3: memref<2x40x128xf32, #tpu.memory_space<vmem>>) attributes {dimension_semantics = [], scalar_prefetch = 0 : i64, scratch_operands = 0 : i64, tpu.core_type = #tpu.core_type<tc>} {
    %c0 = arith.constant 0 : index
    %c0_0 = arith.constant 0 : index
    %c0_1 = arith.constant 0 : index
    %0 = vector.load %arg0[%c0, %c0_0, %c0_1] : memref<2x40x16xf32, #tpu.memory_space<vmem>>, vector<2x40x16xf32>
    %c0_2 = arith.constant 0 : index
    %c0_3 = arith.constant 0 : index
    %1 = vector.load %arg2[%c0_2, %c0_3] : memref<16x128xf32, #tpu.memory_space<vmem>>, vector<16x128xf32>
    %2 = vector.shape_cast %1 : vector<16x128xf32> to vector<1x16x128xf32>
    %3 = vector.shape_cast %2 : vector<1x16x128xf32> to vector<1x16x128xf32>
    %4 = vector.broadcast %3 : vector<1x16x128xf32> to vector<2x16x128xf32>
    "tpu.trace_start"() <{level = 10 : i32, message = "bnf,bfo->bno"}> : () -> ()
    %cst = arith.constant dense<0.000000e+00> : vector<2x40x128xf32>
    %5 = tpu.matmul %0, %4, %cst {dimension_numbers = #tpu.dot_dimension_numbers<[2], [1], [1], [2], [0, 0, 0, 1, 1, 2], [0], [0]>} : vector<2x40x16xf32>, vector<2x16x128xf32>, vector<2x40x128xf32> -> vector<2x40x128xf32>
    "tpu.trace_stop"() : () -> ()
    %c0_4 = arith.constant 0 : index
    %c0_5 = arith.constant 0 : index
    %c0_6 = arith.constant 0 : index
    %6 = vector.load %arg1[%c0_4, %c0_5, %c0_6] : memref<2x40x40xf32, #tpu.memory_space<vmem>>, vector<2x20x20xf32>
    %7 = vector.extract_strided_slice %5 {offsets = [0, 0, 0], sizes = [2, 20, 128], strides = [1, 1, 1]} : vector<2x40x128xf32> to vector<2x20x128xf32>
    "tpu.trace_start"() <{level = 10 : i32, message = "bij,bjo->bio"}> : () -> ()
    %cst_7 = arith.constant dense<0.000000e+00> : vector<2x20x128xf32>
    %8 = tpu.matmul %6, %7, %cst_7 {dimension_numbers = #tpu.dot_dimension_numbers<[2], [1], [1], [2], [0, 0, 0, 1, 1, 2], [0], [0]>} : vector<2x20x20xf32>, vector<2x20x128xf32>, vector<2x20x128xf32> -> vector<2x20x128xf32>
    "tpu.trace_stop"() : () -> ()
    %cst_8 = arith.constant dense<0.000000e+00> : vector<20x128xf32>
    %9 = vector.multi_reduction <add>, %8, %cst_8 [0] : vector<2x20x128xf32> to vector<20x128xf32>
    %10 = vector.shape_cast %9 : vector<20x128xf32> to vector<1x20x128xf32>
    %cst_9 = arith.constant 2.000000e+00 : f32
    %11 = vector.broadcast %cst_9 : f32 to vector<1x20x128xf32>
    %12 = arith.divf %10, %11 : vector<1x20x128xf32>
    %13 = arith.mulf %8, %8 : vector<2x20x128xf32>
    %cst_10 = arith.constant dense<0.000000e+00> : vector<20x128xf32>
    %14 = vector.multi_reduction <add>, %13, %cst_10 [0] : vector<2x20x128xf32> to vector<20x128xf32>
    %15 = vector.shape_cast %14 : vector<20x128xf32> to vector<1x20x128xf32>
    %cst_11 = arith.constant 2.000000e+00 : f32
    %16 = vector.broadcast %cst_11 : f32 to vector<1x20x128xf32>
    %17 = arith.divf %15, %16 : vector<1x20x128xf32>
    %18 = arith.mulf %12, %12 : vector<1x20x128xf32>
    %19 = arith.subf %17, %18 : vector<1x20x128xf32>
    %cst_12 = arith.constant 0.000000e+00 : f32
    %20 = vector.broadcast %cst_12 : f32 to vector<1x20x128xf32>
    %21 = arith.maximumf %19, %20 : vector<1x20x128xf32>
    %22 = vector.broadcast %12 : vector<1x20x128xf32> to vector<2x20x128xf32>
    %23 = arith.subf %8, %22 : vector<2x20x128xf32>
    %cst_13 = arith.constant 9.99999974E-6 : f32
    %24 = vector.broadcast %cst_13 : f32 to vector<1x20x128xf32>
    %25 = arith.addf %21, %24 : vector<1x20x128xf32>
    %26 = math.rsqrt %25 : vector<1x20x128xf32>
    %27 = vector.broadcast %26 : vector<1x20x128xf32> to vector<2x20x128xf32>
    %28 = arith.mulf %23, %27 : vector<2x20x128xf32>
    %c0_14 = arith.constant 0 : index
    %c10 = arith.constant 10 : index
    %c10_15 = arith.constant 10 : index
    %29 = vector.load %arg1[%c0_14, %c10, %c10_15] : memref<2x40x40xf32, #tpu.memory_space<vmem>>, vector<2x20x20xf32>
    %30 = vector.extract_strided_slice %5 {offsets = [0, 10, 0], sizes = [2, 20, 128], strides = [1, 1, 1]} : vector<2x40x128xf32> to vector<2x20x128xf32>
    "tpu.trace_start"() <{level = 10 : i32, message = "bij,bjo->bio"}> : () -> ()
    %cst_16 = arith.constant dense<0.000000e+00> : vector<2x20x128xf32>
    %31 = tpu.matmul %29, %30, %cst_16 {dimension_numbers = #tpu.dot_dimension_numbers<[2], [1], [1], [2], [0, 0, 0, 1, 1, 2], [0], [0]>} : vector<2x20x20xf32>, vector<2x20x128xf32>, vector<2x20x128xf32> -> vector<2x20x128xf32>
    "tpu.trace_stop"() : () -> ()
    %cst_17 = arith.constant dense<0.000000e+00> : vector<20x128xf32>
    %32 = vector.multi_reduction <add>, %31, %cst_17 [0] : vector<2x20x128xf32> to vector<20x128xf32>
    %33 = vector.shape_cast %32 : vector<20x128xf32> to vector<1x20x128xf32>
    %cst_18 = arith.constant 2.000000e+00 : f32
    %34 = vector.broadcast %cst_18 : f32 to vector<1x20x128xf32>
    %35 = arith.divf %33, %34 : vector<1x20x128xf32>
    %36 = arith.mulf %31, %31 : vector<2x20x128xf32>
    %cst_19 = arith.constant dense<0.000000e+00> : vector<20x128xf32>
    %37 = vector.multi_reduction <add>, %36, %cst_19 [0] : vector<2x20x128xf32> to vector<20x128xf32>
    %38 = vector.shape_cast %37 : vector<20x128xf32> to vector<1x20x128xf32>
    %cst_20 = arith.constant 2.000000e+00 : f32
    %39 = vector.broadcast %cst_20 : f32 to vector<1x20x128xf32>
    %40 = arith.divf %38, %39 : vector<1x20x128xf32>
    %41 = arith.mulf %35, %35 : vector<1x20x128xf32>
    %42 = arith.subf %40, %41 : vector<1x20x128xf32>
    %cst_21 = arith.constant 0.000000e+00 : f32
    %43 = vector.broadcast %cst_21 : f32 to vector<1x20x128xf32>
    %44 = arith.maximumf %42, %43 : vector<1x20x128xf32>
    %45 = vector.broadcast %35 : vector<1x20x128xf32> to vector<2x20x128xf32>
    %46 = arith.subf %31, %45 : vector<2x20x128xf32>
    %cst_22 = arith.constant 9.99999974E-6 : f32
    %47 = vector.broadcast %cst_22 : f32 to vector<1x20x128xf32>
    %48 = arith.addf %44, %47 : vector<1x20x128xf32>
    %49 = math.rsqrt %48 : vector<1x20x128xf32>
    %50 = vector.broadcast %49 : vector<1x20x128xf32> to vector<2x20x128xf32>
    %51 = arith.mulf %46, %50 : vector<2x20x128xf32>
    %c0_23 = arith.constant 0 : index
    %c20 = arith.constant 20 : index
    %c20_24 = arith.constant 20 : index
    %52 = vector.load %arg1[%c0_23, %c20, %c20_24] : memref<2x40x40xf32, #tpu.memory_space<vmem>>, vector<2x20x20xf32>
    %53 = vector.extract_strided_slice %5 {offsets = [0, 20, 0], sizes = [2, 20, 128], strides = [1, 1, 1]} : vector<2x40x128xf32> to vector<2x20x128xf32>
    "tpu.trace_start"() <{level = 10 : i32, message = "bij,bjo->bio"}> : () -> ()
    %cst_25 = arith.constant dense<0.000000e+00> : vector<2x20x128xf32>
    %54 = tpu.matmul %52, %53, %cst_25 {dimension_numbers = #tpu.dot_dimension_numbers<[2], [1], [1], [2], [0, 0, 0, 1, 1, 2], [0], [0]>} : vector<2x20x20xf32>, vector<2x20x128xf32>, vector<2x20x128xf32> -> vector<2x20x128xf32>
    "tpu.trace_stop"() : () -> ()
    %cst_26 = arith.constant dense<0.000000e+00> : vector<20x128xf32>
    %55 = vector.multi_reduction <add>, %54, %cst_26 [0] : vector<2x20x128xf32> to vector<20x128xf32>
    %56 = vector.shape_cast %55 : vector<20x128xf32> to vector<1x20x128xf32>
    %cst_27 = arith.constant 2.000000e+00 : f32
    %57 = vector.broadcast %cst_27 : f32 to vector<1x20x128xf32>
    %58 = arith.divf %56, %57 : vector<1x20x128xf32>
    %59 = arith.mulf %54, %54 : vector<2x20x128xf32>
    %cst_28 = arith.constant dense<0.000000e+00> : vector<20x128xf32>
    %60 = vector.multi_reduction <add>, %59, %cst_28 [0] : vector<2x20x128xf32> to vector<20x128xf32>
    %61 = vector.shape_cast %60 : vector<20x128xf32> to vector<1x20x128xf32>
    %cst_29 = arith.constant 2.000000e+00 : f32
    %62 = vector.broadcast %cst_29 : f32 to vector<1x20x128xf32>
    %63 = arith.divf %61, %62 : vector<1x20x128xf32>
    %64 = arith.mulf %58, %58 : vector<1x20x128xf32>
    %65 = arith.subf %63, %64 : vector<1x20x128xf32>
    %cst_30 = arith.constant 0.000000e+00 : f32
    %66 = vector.broadcast %cst_30 : f32 to vector<1x20x128xf32>
    %67 = arith.maximumf %65, %66 : vector<1x20x128xf32>
    %68 = vector.broadcast %58 : vector<1x20x128xf32> to vector<2x20x128xf32>
    %69 = arith.subf %54, %68 : vector<2x20x128xf32>
    %cst_31 = arith.constant 9.99999974E-6 : f32
    %70 = vector.broadcast %cst_31 : f32 to vector<1x20x128xf32>
    %71 = arith.addf %67, %70 : vector<1x20x128xf32>
    %72 = math.rsqrt %71 : vector<1x20x128xf32>
    %73 = vector.broadcast %72 : vector<1x20x128xf32> to vector<2x20x128xf32>
    %74 = arith.mulf %69, %73 : vector<2x20x128xf32>
    %75 = vector.extract_strided_slice %28 {offsets = [0, 0, 0], sizes = [2, 10, 128], strides = [1, 1, 1]} : vector<2x20x128xf32> to vector<2x10x128xf32>
    %c0_32 = arith.constant 0 : index
    %c0_33 = arith.constant 0 : index
    %c0_34 = arith.constant 0 : index
    %76 = vector.load %arg3[%c0_32, %c0_33, %c0_34] : memref<2x40x128xf32, #tpu.memory_space<vmem>>, vector<2x10x128xf32>
    tpu.vector_store %arg3[%c0_32, %c0_33, %c0_34], %75 {strides = array<i32>} : memref<2x40x128xf32, #tpu.memory_space<vmem>>, vector<2x10x128xf32>,
    %77 = vector.extract_strided_slice %28 {offsets = [0, 10, 0], sizes = [2, 10, 128], strides = [1, 1, 1]} : vector<2x20x128xf32> to vector<2x10x128xf32>
    %78 = vector.extract_strided_slice %51 {offsets = [0, 0, 0], sizes = [2, 10, 128], strides = [1, 1, 1]} : vector<2x20x128xf32> to vector<2x10x128xf32>
    %79 = arith.addf %77, %78 : vector<2x10x128xf32>
    %cst_35 = arith.constant 5.000000e-01 : f32
    %80 = vector.broadcast %cst_35 : f32 to vector<2x10x128xf32>
    %81 = arith.mulf %80, %79 : vector<2x10x128xf32>
    %c0_36 = arith.constant 0 : index
    %c10_37 = arith.constant 10 : index
    %c0_38 = arith.constant 0 : index
    %82 = vector.load %arg3[%c0_36, %c10_37, %c0_38] : memref<2x40x128xf32, #tpu.memory_space<vmem>>, vector<2x10x128xf32>
    tpu.vector_store %arg3[%c0_36, %c10_37, %c0_38], %81 {strides = array<i32>} : memref<2x40x128xf32, #tpu.memory_space<vmem>>, vector<2x10x128xf32>,
    %83 = vector.extract_strided_slice %51 {offsets = [0, 10, 0], sizes = [2, 10, 128], strides = [1, 1, 1]} : vector<2x20x128xf32> to vector<2x10x128xf32>
    %84 = vector.extract_strided_slice %74 {offsets = [0, 0, 0], sizes = [2, 10, 128], strides = [1, 1, 1]} : vector<2x20x128xf32> to vector<2x10x128xf32>
    %85 = arith.addf %83, %84 : vector<2x10x128xf32>
    %cst_39 = arith.constant 5.000000e-01 : f32
    %86 = vector.broadcast %cst_39 : f32 to vector<2x10x128xf32>
    %87 = arith.mulf %86, %85 : vector<2x10x128xf32>
    %c0_40 = arith.constant 0 : index
    %c20_41 = arith.constant 20 : index
    %c0_42 = arith.constant 0 : index
    %88 = vector.load %arg3[%c0_40, %c20_41, %c0_42] : memref<2x40x128xf32, #tpu.memory_space<vmem>>, vector<2x10x128xf32>
    tpu.vector_store %arg3[%c0_40, %c20_41, %c0_42], %87 {strides = array<i32>} : memref<2x40x128xf32, #tpu.memory_space<vmem>>, vector<2x10x128xf32>,
    %89 = vector.extract_strided_slice %74 {offsets = [0, 10, 0], sizes = [2, 10, 128], strides = [1, 1, 1]} : vector<2x20x128xf32> to vector<2x10x128xf32>
    %c0_43 = arith.constant 0 : index
    %c30 = arith.constant 30 : index
    %c0_44 = arith.constant 0 : index
    %90 = vector.load %arg3[%c0_43, %c30, %c0_44] : memref<2x40x128xf32, #tpu.memory_space<vmem>>, vector<2x10x128xf32>
    tpu.vector_store %arg3[%c0_43, %c30, %c0_44], %89 {strides = array<i32>} : memref<2x40x128xf32, #tpu.memory_space<vmem>>, vector<2x10x128xf32>,
    return
  }
}

</mosaic_0001>

<llo_original>
// kernel: tpu_custom_call.1
$region0: #{tpu_custom_call.1}
  #allocation0 [shape = 'u32[]', space=smem, size = 0x4, offset = 0x4, fixed_abs, tag = 'smem constant byte address 0x4 - core index']
  #allocation1 [shape = 'u32[144,128]{1,0:T(1,128)}', space=vmem, size = 0x12000, scoped, tag = 'internal scratch']
  %s0 = inlined_call_operand.vmem [shape: f32[2,40,16], index: 0, kind: input, shape index: {}]
  %s1 = inlined_call_operand.vmem [shape: f32[2,40,40], index: 1, kind: input, shape index: {}]
  %s2 = inlined_call_operand.vmem [shape: f32[16,128], index: 2, kind: input, shape index: {}]
  %s3 = inlined_call_operand.hbm [shape: f32[2,40,128], index: 3, kind: output, shape index: {}]
  %s4 = sld [smem:[#allocation0]]
  $region22: #{tpu_custom_call.1} parent=0
    _
  %s6 = ssub.s32 1, %s4
  %s7 = scalar_select 0, %s6, %s4
  $region1: #{tpu_custom_call.1} parent=0
    #allocation2 [shape = 'u8[40960]{0}', space=vmem, size = 0xa000, scoped, tag = 'output window, operand 0, single buffered']
    #allocation3 [shape = 's32[1]{0}', space=sflag, size = 0x4, scoped, tag = 'scoped memory for tpu_custom_call.1']
    %8 = vsyncpa [#allocation3], 0
    // Predicated region
    $region2: #{tpu_custom_call.1} parent=1 // pred_check
      _
    $region3: #{tpu_custom_call.1} parent=1 // pred_check_branch
      %10 = sbr.rel (0) target = $region5
    $region4: #{tpu_custom_call.1} parent=1 // pred_region
      _
    $region5: #{tpu_custom_call.1} parent=1 // pred_fallthru
      _
    // Predicated region
    $region6: #{tpu_custom_call.1} parent=1 // pred_check
      _
    $region7: #{tpu_custom_call.1} parent=1 // pred_check_branch
      %12 = sbr.rel (0) target = $region9
    $region8: #{tpu_custom_call.1} parent=1 // pred_region
      _
    $region9: #{tpu_custom_call.1} parent=1 // pred_fallthru
      _
    // Predicated region
    $region10: #{tpu_custom_call.1} parent=1 // pred_check
      _
    $region11: #{tpu_custom_call.1} parent=1 // pred_check_branch
      %14 = sbr.rel (0) target = $region13
    $region12: #{tpu_custom_call.1} parent=1 // pred_region
      _
    $region13: #{tpu_custom_call.1} parent=1 // pred_fallthru
      _
    %v15 = vld [vmem:[%s0] sm:$0xff]
    %v16 = vld [vmem:[%s0 + $0x8] sm:$0xff]
    %v17 = vld [vmem:[%s0 + $0x10] sm:$0xff]
    %v18 = vld [vmem:[%s0 + $0x18] sm:$0xff]
    %v19 = vld [vmem:[%s0 + $0x20] sm:$0xff]
    %v20 = vld [vmem:[%s0 + $0x28] sm:$0xff]
    %v21 = vld [vmem:[%s0 + $0x30] sm:$0xff]
    %v22 = vld [vmem:[%s0 + $0x38] sm:$0xff]
    %v23 = vld [vmem:[%s0 + $0x40] sm:$0xff]
    %v24 = vld [vmem:[%s0 + $0x48] sm:$0xff]
    %v25 = vld [vmem:[%s2] sm:$0xff]
    %v26 = vld [vmem:[%s2 + $0x8] sm:$0xff]
    %vm27 = vcmask 130048
    %v29 = vsel %vm27, %v15, 0
    %v32 = vsel %vm27, %v16, 0
    %v35 = vsel %vm27, %v17, 0
    %v38 = vsel %vm27, %v18, 0
    %v41 = vsel %vm27, %v19, 0
    %43 = vmatprep.subr.mxu0 0.0
    %44 = vmatpush1.msra.mxu0 %v25
    %45 = vmatprep.subr.mxu0 0.0
    %46 = vmatpush1.msra.mxu0 %v26
    %47 = vmatprep.subr.mxu0 0.0
    %48 = vmatpush1.msra.mxu0 0.0
    %49 = vmatprep.subr.mxu0 0.0
    %50 = vmatpush1.msra.mxu0 0.0
    %51 = vmatprep.subr.mxu0 0.0
    %52 = vmatpush1.msra.mxu0 0.0
    %53 = vmatprep.subr.mxu0 0.0
    %54 = vmatpush1.msra.mxu0 0.0
    %55 = vmatprep.subr.mxu0 0.0
    %56 = vmatpush1.msra.mxu0 0.0
    %57 = vmatprep.subr.mxu0 0.0
    %58 = vmatpush1.msra.mxu0 0.0
    %59 = vmatprep.subr.mxu0 0.0
    %60 = vmatpush1.msra.mxu0 0.0
    %61 = vmatprep.subr.mxu0 0.0
    %62 = vmatpush1.msra.mxu0 0.0
    %63 = vmatprep.subr.mxu0 0.0
    %64 = vmatpush1.msra.mxu0 0.0
    %65 = vmatprep.subr.mxu0 0.0
    %66 = vmatpush1.msra.mxu0 0.0
    %67 = vmatprep.subr.mxu0 0.0
    %68 = vmatpush1.msra.mxu0 0.0
    %69 = vmatprep.subr.mxu0 0.0
    %70 = vmatpush1.msra.mxu0 0.0
    %71 = vmatprep.subr.mxu0 0.0
    %72 = vmatpush1.msra.mxu0 0.0
    %73 = vmatprep.subr.mxu0 0.0
    %74 = vmatpush1.msra.mxu0 0.0
    %75 = vmatprep.subr.mxu0 0.0
    %76 = vmatpush1.msra.mxu0 0.0
    %77 = vmatprep.subr.mxu0 0.0
    %78 = vmatpush1.msra.mxu0 0.0
    %79 = vmatprep.subr.mxu0 0.0
    %80 = vmatpush1.msra.mxu0 0.0
    %81 = vmatprep.subr.mxu0 0.0
    %82 = vmatpush1.msra.mxu0 0.0
    %83 = vmatprep.subr.mxu0 0.0
    %84 = vmatpush1.msra.mxu0 0.0
    %85 = vmatprep.subr.mxu0 0.0
    %86 = vmatpush1.msra.mxu0 0.0
    %87 = vmatprep.subr.mxu0 0.0
    %88 = vmatpush1.msra.mxu0 0.0
    %89 = vmatprep.subr.mxu0 0.0
    %90 = vmatpush1.msra.mxu0 0.0
    %91 = vmatprep.subr.mxu0 0.0
    %92 = vmatpush1.msra.mxu0 0.0
    %93 = vmatprep.subr.mxu0 0.0
    %94 = vmatpush1.msra.mxu0 0.0
    %95 = vmatprep.subr.mxu0 0.0
    %96 = vmatpush1.msra.mxu0 0.0
    %97 = vmatprep.subr.mxu0 0.0
    %98 = vmatpush1.msra.mxu0 0.0
    %99 = vmatprep.subr.mxu0 0.0
    %100 = vmatpush1.msra.mxu0 0.0
    %101 = vmatprep.subr.mxu0 0.0
    %102 = vmatpush1.msra.mxu0 0.0
    %103 = vmatprep.subr.mxu0 0.0
    %104 = vmatpush1.msra.mxu0 0.0
    %105 = vmatprep.subr.mxu0 0.0
    %106 = vmatpush1.msra.mxu0 0.0
    %107 = vmatprep.mubr.f32.mxu0 0.0
    %108 = vmatmul.mubr.f32.gmra.mrb[0].mxu0 %v29
    %v109 = vpop.f32.mrb[0].mxu0
    %v110 = vadd.f32 0.0, %v109
    %v111 = vpop.f32.mrb[0].mxu0
    %112 = vmatprep.mubr.f32.mxu0 0.0
    %113 = vmatmul.mubr.f32.gmra.mrb[0].mxu0 %v32
    %v114 = vpop.f32.mrb[0].mxu0
    %v115 = vadd.f32 0.0, %v114
    %v116 = vpop.f32.mrb[0].mxu0
    %117 = vmatprep.mubr.f32.mxu0 0.0
    %118 = vmatmul.mubr.f32.gmra.mrb[0].mxu0 %v35
    %v119 = vpop.f32.mrb[0].mxu0
    %v120 = vadd.f32 0.0, %v119
    %v121 = vpop.f32.mrb[0].mxu0
    %122 = vmatprep.mubr.f32.mxu0 0.0
    %123 = vmatmul.mubr.f32.gmra.mrb[0].mxu0 %v38
    %v124 = vpop.f32.mrb[0].mxu0
    %v125 = vadd.f32 0.0, %v124
    %v126 = vpop.f32.mrb[0].mxu0
    %127 = vmatprep.mubr.f32.mxu0 0.0
    %128 = vmatmul.mubr.f32.gmra.mrb[0].mxu0 %v41
    %v129 = vpop.f32.mrb[0].mxu0
    %v130 = vadd.f32 0.0, %v129
    %v131 = vpop.f32.mrb[0].mxu0
    %132 = vdwg.mxu0
    %v134 = vsel %vm27, %v20, 0
    %v137 = vsel %vm27, %v21, 0
    %v140 = vsel %vm27, %v22, 0
    %v143 = vsel %vm27, %v23, 0
    %v146 = vsel %vm27, %v24, 0
    %148 = vmatprep.subr.mxu0 0.0
    %149 = vmatpush1.msra.mxu0 %v25
    %150 = vmatprep.subr.mxu0 0.0
    %151 = vmatpush1.msra.mxu0 %v26
    %152 = vmatprep.subr.mxu0 0.0
    %153 = vmatpush1.msra.mxu0 0.0
    %154 = vmatprep.subr.mxu0 0.0
    %155 = vmatpush1.msra.mxu0 0.0
    %156 = vmatprep.subr.mxu0 0.0
    %157 = vmatpush1.msra.mxu0 0.0
    %158 = vmatprep.subr.mxu0 0.0
    %159 = vmatpush1.msra.mxu0 0.0
    %160 = vmatprep.subr.mxu0 0.0
    %161 = vmatpush1.msra.mxu0 0.0
    %162 = vmatprep.subr.mxu0 0.0
    %163 = vmatpush1.msra.mxu0 0.0
    %164 = vmatprep.subr.mxu0 0.0
    %165 = vmatpush1.msra.mxu0 0.0
    %166 = vmatprep.subr.mxu0 0.0
    %167 = vmatpush1.msra.mxu0 0.0
    %168 = vmatprep.subr.mxu0 0.0
    %169 = vmatpush1.msra.mxu0 0.0
    %170 = vmatprep.subr.mxu0 0.0
    %171 = vmatpush1.msra.mxu0 0.0
    %172 = vmatprep.subr.mxu0 0.0
    %173 = vmatpush1.msra.mxu0 0.0
    %174 = vmatprep.subr.mxu0 0.0
    %175 = vmatpush1.msra.mxu0 0.0
    %176 = vmatprep.subr.mxu0 0.0
    %177 = vmatpush1.msra.mxu0 0.0
    %178 = vmatprep.subr.mxu0 0.0
    %179 = vmatpush1.msra.mxu0 0.0
    %180 = vmatprep.subr.mxu0 0.0
    %181 = vmatpush1.msra.mxu0 0.0
    %182 = vmatprep.subr.mxu0 0.0
    %183 = vmatpush1.msra.mxu0 0.0
    %184 = vmatprep.subr.mxu0 0.0
    %185 = vmatpush1.msra.mxu0 0.0
    %186 = vmatprep.subr.mxu0 0.0
    %187 = vmatpush1.msra.mxu0 0.0
    %188 = vmatprep.subr.mxu0 0.0
    %189 = vmatpush1.msra.mxu0 0.0
    %190 = vmatprep.subr.mxu0 0.0
    %191 = vmatpush1.msra.mxu0 0.0
    %192 = vmatprep.subr.mxu0 0.0
    %193 = vmatpush1.msra.mxu0 0.0
    %194 = vmatprep.subr.mxu0 0.0
    %195 = vmatpush1.msra.mxu0 0.0
    %196 = vmatprep.subr.mxu0 0.0
    %197 = vmatpush1.msra.mxu0 0.0
    %198 = vmatprep.subr.mxu0 0.0
    %199 = vmatpush1.msra.mxu0 0.0
    %200 = vmatprep.subr.mxu0 0.0
    %201 = vmatpush1.msra.mxu0 0.0
    %202 = vmatprep.subr.mxu0 0.0
    %203 = vmatpush1.msra.mxu0 0.0
    %204 = vmatprep.subr.mxu0 0.0
    %205 = vmatpush1.msra.mxu0 0.0
    %206 = vmatprep.subr.mxu0 0.0
    %207 = vmatpush1.msra.mxu0 0.0
    %208 = vmatprep.subr.mxu0 0.0
    %209 = vmatpush1.msra.mxu0 0.0
    %210 = vmatprep.subr.mxu0 0.0
    %211 = vmatpush1.msra.mxu0 0.0
    %212 = vmatprep.mubr.f32.mxu0 0.0
    %213 = vmatmul.mubr.f32.gmra.mrb[0].mxu0 %v134
    %v214 = vpop.f32.mrb[0].mxu0
    %v215 = vadd.f32 0.0, %v214
    %v216 = vpop.f32.mrb[0].mxu0
    %217 = vmatprep.mubr.f32.mxu0 0.0
    %218 = vmatmul.mubr.f32.gmra.mrb[0].mxu0 %v137
    %v219 = vpop.f32.mrb[0].mxu0
    %v220 = vadd.f32 0.0, %v219
    %v221 = vpop.f32.mrb[0].mxu0
    %222 = vmatprep.mubr.f32.mxu0 0.0
    %223 = vmatmul.mubr.f32.gmra.mrb[0].mxu0 %v140
    %v224 = vpop.f32.mrb[0].mxu0
    %v225 = vadd.f32 0.0, %v224
    %v226 = vpop.f32.mrb[0].mxu0
    %227 = vmatprep.mubr.f32.mxu0 0.0
    %228 = vmatmul.mubr.f32.gmra.mrb[0].mxu0 %v143
    %v229 = vpop.f32.mrb[0].mxu0
    %v230 = vadd.f32 0.0, %v229
    %v231 = vpop.f32.mrb[0].mxu0
    %232 = vmatprep.mubr.f32.mxu0 0.0
    %233 = vmatmul.mubr.f32.gmra.mrb[0].mxu0 %v146
    %v234 = vpop.f32.mrb[0].mxu0
    %v235 = vadd.f32 0.0, %v234
    %v236 = vpop.f32.mrb[0].mxu0
    %237 = vdwg.mxu0
    %v238 = vld [vmem:[%s1] sm:$0xff]
    %v239 = vld [vmem:[%s1 + $0x8] sm:$0xff]
    %v240 = vld [vmem:[%s1 + $0x10] sm:$0xf]
    %v241 = vld [vmem:[%s1 + $0x28] sm:$0xff]
    %v242 = vld [vmem:[%s1 + $0x30] sm:$0xff]
    %v243 = vld [vmem:[%s1 + $0x38] sm:$0xf]
    %vm244 = vcmask 162816
    %v246 = vsel %vm244, %v238, 0
    %v249 = vsel %vm244, %v239, 0
    %v252 = vsel %vm244, %v240, 0
    %vm254 = vcmask 1043456
    %v256 = vsel %vm254, %v120, 0
    %258 = vmatprep.subr.mxu0 0.0
    %259 = vmatpush1.msra.mxu0 %v110
    %260 = vmatprep.subr.mxu0 0.0
    %261 = vmatpush1.msra.mxu0 %v115
    %262 = vmatprep.subr.mxu0 0.0
    %263 = vmatpush1.msra.mxu0 %v256
    %264 = vmatprep.subr.mxu0 0.0
    %265 = vmatpush1.msra.mxu0 0.0
    %266 = vmatprep.subr.mxu0 0.0
    %267 = vmatpush1.msra.mxu0 0.0
    %268 = vmatprep.subr.mxu0 0.0
    %269 = vmatpush1.msra.mxu0 0.0
    %270 = vmatprep.subr.mxu0 0.0
    %271 = vmatpush1.msra.mxu0 0.0
    %272 = vmatprep.subr.mxu0 0.0
    %273 = vmatpush1.msra.mxu0 0.0
    %274 = vmatprep.subr.mxu0 0.0
    %275 = vmatpush1.msra.mxu0 0.0
    %276 = vmatprep.subr.mxu0 0.0
    %277 = vmatpush1.msra.mxu0 0.0
    %278 = vmatprep.subr.mxu0 0.0
    %279 = vmatpush1.msra.mxu0 0.0
    %280 = vmatprep.subr.mxu0 0.0
    %281 = vmatpush1.msra.mxu0 0.0
    %282 = vmatprep.subr.mxu0 0.0
    %283 = vmatpush1.msra.mxu0 0.0
    %284 = vmatprep.subr.mxu0 0.0
    %285 = vmatpush1.msra.mxu0 0.0
    %286 = vmatprep.subr.mxu0 0.0
    %287 = vmatpush1.msra.mxu0 0.0
    %288 = vmatprep.subr.mxu0 0.0
    %289 = vmatpush1.msra.mxu0 0.0
    %290 = vmatprep.subr.mxu0 0.0
    %291 = vmatpush1.msra.mxu0 0.0
    %292 = vmatprep.subr.mxu0 0.0
    %293 = vmatpush1.msra.mxu0 0.0
    %294 = vmatprep.subr.mxu0 0.0
    %295 = vmatpush1.msra.mxu0 0.0
    %296 = vmatprep.subr.mxu0 0.0
    %297 = vmatpush1.msra.mxu0 0.0
    %298 = vmatprep.subr.mxu0 0.0
    %299 = vmatpush1.msra.mxu0 0.0
    %300 = vmatprep.subr.mxu0 0.0
    %301 = vmatpush1.msra.mxu0 0.0
    %302 = vmatprep.subr.mxu0 0.0
    %303 = vmatpush1.msra.mxu0 0.0
    %304 = vmatprep.subr.mxu0 0.0
    %305 = vmatpush1.msra.mxu0 0.0
    %306 = vmatprep.subr.mxu0 0.0
    %307 = vmatpush1.msra.mxu0 0.0
    %308 = vmatprep.subr.mxu0 0.0
    %309 = vmatpush1.msra.mxu0 0.0
    %310 = vmatprep.subr.mxu0 0.0
    %311 = vmatpush1.msra.mxu0 0.0
    %312 = vmatprep.subr.mxu0 0.0
    %313 = vmatpush1.msra.mxu0 0.0
    %314 = vmatprep.subr.mxu0 0.0
    %315 = vmatpush1.msra.mxu0 0.0
    %316 = vmatprep.subr.mxu0 0.0
    %317 = vmatpush1.msra.mxu0 0.0
    %318 = vmatprep.subr.mxu0 0.0
    %319 = vmatpush1.msra.mxu0 0.0
    %320 = vmatprep.subr.mxu0 0.0
    %321 = vmatpush1.msra.mxu0 0.0
    %322 = vmatprep.mubr.f32.mxu0 0.0
    %323 = vmatmul.mubr.f32.gmra.mrb[0].mxu0 %v246
    %v324 = vpop.f32.mrb[0].mxu0
    %v325 = vadd.f32 0.0, %v324
    %v326 = vpop.f32.mrb[0].mxu0
    %327 = vmatprep.mubr.f32.mxu0 0.0
    %328 = vmatmul.mubr.f32.gmra.mrb[0].mxu0 %v249
    %v329 = vpop.f32.mrb[0].mxu0
    %v330 = vadd.f32 0.0, %v329
    %v331 = vpop.f32.mrb[0].mxu0
    %332 = vmatprep.mubr.f32.mxu0 0.0
    %333 = vmatmul.mubr.f32.gmra.mrb[0].mxu0 %v252
    %v334 = vpop.f32.mrb[0].mxu0
    %v335 = vadd.f32 0.0, %v334
    %v336 = vpop.f32.mrb[0].mxu0
    %337 = vdwg.mxu0
    %v339 = vsel %vm244, %v241, 0
    %v342 = vsel %vm244, %v242, 0
    %v345 = vsel %vm244, %v243, 0
    %v348 = vsel %vm254, %v225, 0
    %350 = vmatprep.subr.mxu0 0.0
    %351 = vmatpush1.msra.mxu0 %v215
    %352 = vmatprep.subr.mxu0 0.0
    %353 = vmatpush1.msra.mxu0 %v220
    %354 = vmatprep.subr.mxu0 0.0
    %355 = vmatpush1.msra.mxu0 %v348
    %356 = vmatprep.subr.mxu0 0.0
    %357 = vmatpush1.msra.mxu0 0.0
    %358 = vmatprep.subr.mxu0 0.0
    %359 = vmatpush1.msra.mxu0 0.0
    %360 = vmatprep.subr.mxu0 0.0
    %361 = vmatpush1.msra.mxu0 0.0
    %362 = vmatprep.subr.mxu0 0.0
    %363 = vmatpush1.msra.mxu0 0.0
    %364 = vmatprep.subr.mxu0 0.0
    %365 = vmatpush1.msra.mxu0 0.0
    %366 = vmatprep.subr.mxu0 0.0
    %367 = vmatpush1.msra.mxu0 0.0
    %368 = vmatprep.subr.mxu0 0.0
    %369 = vmatpush1.msra.mxu0 0.0
    %370 = vmatprep.subr.mxu0 0.0
    %371 = vmatpush1.msra.mxu0 0.0
    %372 = vmatprep.subr.mxu0 0.0
    %373 = vmatpush1.msra.mxu0 0.0
    %374 = vmatprep.subr.mxu0 0.0
    %375 = vmatpush1.msra.mxu0 0.0
    %376 = vmatprep.subr.mxu0 0.0
    %377 = vmatpush1.msra.mxu0 0.0
    %378 = vmatprep.subr.mxu0 0.0
    %379 = vmatpush1.msra.mxu0 0.0
    %380 = vmatprep.subr.mxu0 0.0
    %381 = vmatpush1.msra.mxu0 0.0
    %382 = vmatprep.subr.mxu0 0.0
    %383 = vmatpush1.msra.mxu0 0.0
    %384 = vmatprep.subr.mxu0 0.0
    %385 = vmatpush1.msra.mxu0 0.0
    %386 = vmatprep.subr.mxu0 0.0
    %387 = vmatpush1.msra.mxu0 0.0
    %388 = vmatprep.subr.mxu0 0.0
    %389 = vmatpush1.msra.mxu0 0.0
    %390 = vmatprep.subr.mxu0 0.0
    %391 = vmatpush1.msra.mxu0 0.0
    %392 = vmatprep.subr.mxu0 0.0
    %393 = vmatpush1.msra.mxu0 0.0
    %394 = vmatprep.subr.mxu0 0.0
    %395 = vmatpush1.msra.mxu0 0.0
    %396 = vmatprep.subr.mxu0 0.0
    %397 = vmatpush1.msra.mxu0 0.0
    %398 = vmatprep.subr.mxu0 0.0
    %399 = vmatpush1.msra.mxu0 0.0
    %400 = vmatprep.subr.mxu0 0.0
    %401 = vmatpush1.msra.mxu0 0.0
    %402 = vmatprep.subr.mxu0 0.0
    %403 = vmatpush1.msra.mxu0 0.0
    %404 = vmatprep.subr.mxu0 0.0
    %405 = vmatpush1.msra.mxu0 0.0
    %406 = vmatprep.subr.mxu0 0.0
    %407 = vmatpush1.msra.mxu0 0.0
    %408 = vmatprep.subr.mxu0 0.0
    %409 = vmatpush1.msra.mxu0 0.0
    %410 = vmatprep.subr.mxu0 0.0
    %411 = vmatpush1.msra.mxu0 0.0
    %412 = vmatprep.subr.mxu0 0.0
    %413 = vmatpush1.msra.mxu0 0.0
    %414 = vmatprep.mubr.f32.mxu0 0.0
    %415 = vmatmul.mubr.f32.gmra.mrb[0].mxu0 %v339
    %v416 = vpop.f32.mrb[0].mxu0
    %v417 = vadd.f32 0.0, %v416
    %v418 = vpop.f32.mrb[0].mxu0
    %419 = vmatprep.mubr.f32.mxu0 0.0
    %420 = vmatmul.mubr.f32.gmra.mrb[0].mxu0 %v342
    %v421 = vpop.f32.mrb[0].mxu0
    %v422 = vadd.f32 0.0, %v421
    %v423 = vpop.f32.mrb[0].mxu0
    %424 = vmatprep.mubr.f32.mxu0 0.0
    %425 = vmatmul.mubr.f32.gmra.mrb[0].mxu0 %v345
    %v426 = vpop.f32.mrb[0].mxu0
    %v427 = vadd.f32 0.0, %v426
    %v428 = vpop.f32.mrb[0].mxu0
    %429 = vdwg.mxu0
    %v430 = vadd.f32 %v325, %v417
    %v431 = vadd.f32 %v330, %v422
    %v432 = vsel %vm254, %v335, 0.0
    %v433 = vsel %vm254, %v427, 0.0
    %v434 = vadd.f32 %v432, %v433
    %v435 = vrcp.pop 2.0
    %v436 = vmul.f32 %v430, %v435
    %v437 = vmul.f32 %v431, %v435
    %v438 = vmul.f32 %v434, %v435
    %v439 = vmul.f32 %v325, %v325
    %v440 = vmul.f32 %v330, %v330
    %v441 = vmul.f32 %v335, %v335
    %v442 = vmul.f32 %v417, %v417
    %v443 = vmul.f32 %v422, %v422
    %v444 = vmul.f32 %v427, %v427
    %v445 = vadd.f32 %v439, %v442
    %v446 = vadd.f32 %v440, %v443
    %v447 = vsel %vm254, %v441, 0.0
    %v448 = vsel %vm254, %v444, 0.0
    %v449 = vadd.f32 %v447, %v448
    %v450 = vmul.f32 %v445, %v435
    %v451 = vmul.f32 %v446, %v435
    %v452 = vmul.f32 %v449, %v435
    %v453 = vmul.f32 %v436, %v436
    %v454 = vmul.f32 %v437, %v437
    %v455 = vmul.f32 %v438, %v438
    %v456 = vsub.f32 %v450, %v453
    %v457 = vsub.f32 %v451, %v454
    %v458 = vsub.f32 %v452, %v455
    %v459 = vmax.f32 %v456, 0.0
    %v460 = vmax.f32 %v457, 0.0
    %v461 = vmax.f32 %v458, 0.0
    %v462 = vsub.f32 %v325, %v436
    %v463 = vsub.f32 %v330, %v437
    %v464 = vsub.f32 %v335, %v438
    %v465 = vsub.f32 %v417, %v436
    %v466 = vsub.f32 %v422, %v437
    %v467 = vsub.f32 %v427, %v438
    %v468 = vadd.f32 %v459, 1e-05
    %v469 = vadd.f32 %v460, 1e-05
    %v470 = vadd.f32 %v461, 1e-05
    %v471 = vrsqrt.pop %v468
    %v472 = vrsqrt.pop %v469
    %v473 = vrsqrt.pop %v470
    %v474 = vmul.f32 %v462, %v471
    %v475 = vmul.f32 %v463, %v472
    %v476 = vmul.f32 %v464, %v473
    %v477 = vmul.f32 %v465, %v471
    %v478 = vmul.f32 %v466, %v472
    %v479 = vmul.f32 %v467, %v473
    %v480 = vld [vmem:[%s1 + $0xa] sm:$0xff]
    %v481 = vld [vmem:[%s1 + $0x12] sm:$0xff]
    %v482 = vld [vmem:[%s1 + $0x1a] sm:$0xf]
    %v483 = vld [vmem:[%s1 + $0x32] sm:$0xff]
    %v484 = vld [vmem:[%s1 + $0x3a] sm:$0xff]
    %v485 = vld [vmem:[%s1 + $0x42] sm:$0xf]
    %489 = vrot.lane.b32.xlu0 %v480, 118
    %v490 = vpop.permute.xlu0 %489
    %491 = vrot.lane.b32.xlu0 %v481, 118
    %v492 = vpop.permute.xlu0 %491
    %493 = vrot.lane.b32.xlu0 %v482, 118
    %v494 = vpop.permute.xlu0 %493
    %vm497 = vcmask 1045504
    %v498 = vrot.slane %v115, 2
    %v499 = vrot.slane %v120, 2
    %v500 = vsel %vm497, %v498, %v499
    %v501 = vrot.slane %v125, 2
    %v502 = vsel %vm497, %v499, %v501
    %v505 = vsel %vm244, %v490, 0
    %v507 = vsel %vm244, %v492, 0
    %v509 = vsel %vm244, %v494, 0
    %v511 = vsel %vm254, %v501, 0
    %513 = vmatprep.subr.mxu0 0.0
    %514 = vmatpush1.msra.mxu0 %v500
    %515 = vmatprep.subr.mxu0 0.0
    %516 = vmatpush1.msra.mxu0 %v502
    %517 = vmatprep.subr.mxu0 0.0
    %518 = vmatpush1.msra.mxu0 %v511
    %519 = vmatprep.subr.mxu0 0.0
    %520 = vmatpush1.msra.mxu0 0.0
    %521 = vmatprep.subr.mxu0 0.0
    %522 = vmatpush1.msra.mxu0 0.0
    %523 = vmatprep.subr.mxu0 0.0
    %524 = vmatpush1.msra.mxu0 0.0
    %525 = vmatprep.subr.mxu0 0.0
    %526 = vmatpush1.msra.mxu0 0.0
    %527 = vmatprep.subr.mxu0 0.0
    %528 = vmatpush1.msra.mxu0 0.0
    %529 = vmatprep.subr.mxu0 0.0
    %530 = vmatpush1.msra.mxu0 0.0
    %531 = vmatprep.subr.mxu0 0.0
    %532 = vmatpush1.msra.mxu0 0.0
    %533 = vmatprep.subr.mxu0 0.0
    %534 = vmatpush1.msra.mxu0 0.0
    %535 = vmatprep.subr.mxu0 0.0
    %536 = vmatpush1.msra.mxu0 0.0
    %537 = vmatprep.subr.mxu0 0.0
    %538 = vmatpush1.msra.mxu0 0.0
    %539 = vmatprep.subr.mxu0 0.0
    %540 = vmatpush1.msra.mxu0 0.0
    %541 = vmatprep.subr.mxu0 0.0
    %542 = vmatpush1.msra.mxu0 0.0
    %543 = vmatprep.subr.mxu0 0.0
    %544 = vmatpush1.msra.mxu0 0.0
    %545 = vmatprep.subr.mxu0 0.0
    %546 = vmatpush1.msra.mxu0 0.0
    %547 = vmatprep.subr.mxu0 0.0
    %548 = vmatpush1.msra.mxu0 0.0
    %549 = vmatprep.subr.mxu0 0.0
    %550 = vmatpush1.msra.mxu0 0.0
    %551 = vmatprep.subr.mxu0 0.0
    %552 = vmatpush1.msra.mxu0 0.0
    %553 = vmatprep.subr.mxu0 0.0
    %554 = vmatpush1.msra.mxu0 0.0
    %555 = vmatprep.subr.mxu0 0.0
    %556 = vmatpush1.msra.mxu0 0.0
    %557 = vmatprep.subr.mxu0 0.0
    %558 = vmatpush1.msra.mxu0 0.0
    %559 = vmatprep.subr.mxu0 0.0
    %560 = vmatpush1.msra.mxu0 0.0
    %561 = vmatprep.subr.mxu0 0.0
    %562 = vmatpush1.msra.mxu0 0.0
    %563 = vmatprep.subr.mxu0 0.0
    %564 = vmatpush1.msra.mxu0 0.0
    %565 = vmatprep.subr.mxu0 0.0
    %566 = vmatpush1.msra.mxu0 0.0
    %567 = vmatprep.subr.mxu0 0.0
    %568 = vmatpush1.msra.mxu0 0.0
    %569 = vmatprep.subr.mxu0 0.0
    %570 = vmatpush1.msra.mxu0 0.0
    %571 = vmatprep.subr.mxu0 0.0
    %572 = vmatpush1.msra.mxu0 0.0
    %573 = vmatprep.subr.mxu0 0.0
    %574 = vmatpush1.msra.mxu0 0.0
    %575 = vmatprep.subr.mxu0 0.0
    %576 = vmatpush1.msra.mxu0 0.0
    %577 = vmatprep.mubr.f32.mxu0 0.0
    %578 = vmatmul.mubr.f32.gmra.mrb[0].mxu0 %v505
    %v579 = vpop.f32.mrb[0].mxu0
    %v580 = vadd.f32 0.0, %v579
    %v581 = vpop.f32.mrb[0].mxu0
    %582 = vmatprep.mubr.f32.mxu0 0.0
    %583 = vmatmul.mubr.f32.gmra.mrb[0].mxu0 %v507
    %v584 = vpop.f32.mrb[0].mxu0
    %v585 = vadd.f32 0.0, %v584
    %v586 = vpop.f32.mrb[0].mxu0
    %587 = vmatprep.mubr.f32.mxu0 0.0
    %588 = vmatmul.mubr.f32.gmra.mrb[0].mxu0 %v509
    %v589 = vpop.f32.mrb[0].mxu0
    %v590 = vadd.f32 0.0, %v589
    %v591 = vpop.f32.mrb[0].mxu0
    %592 = vdwg.mxu0
    %596 = vrot.lane.b32.xlu0 %v483, 118
    %v597 = vpop.permute.xlu0 %596
    %598 = vrot.lane.b32.xlu0 %v484, 118
    %v599 = vpop.permute.xlu0 %598
    %600 = vrot.lane.b32.xlu0 %v485, 118
    %v601 = vpop.permute.xlu0 %600
    %v604 = vrot.slane %v220, 2
    %v605 = vrot.slane %v225, 2
    %v606 = vsel %vm497, %v604, %v605
    %v607 = vrot.slane %v230, 2
    %v608 = vsel %vm497, %v605, %v607
    %v611 = vsel %vm244, %v597, 0
    %v613 = vsel %vm244, %v599, 0
    %v615 = vsel %vm244, %v601, 0
    %v617 = vsel %vm254, %v607, 0
    %619 = vmatprep.subr.mxu0 0.0
    %620 = vmatpush1.msra.mxu0 %v606
    %621 = vmatprep.subr.mxu0 0.0
    %622 = vmatpush1.msra.mxu0 %v608
    %623 = vmatprep.subr.mxu0 0.0
    %624 = vmatpush1.msra.mxu0 %v617
    %625 = vmatprep.subr.mxu0 0.0
    %626 = vmatpush1.msra.mxu0 0.0
    %627 = vmatprep.subr.mxu0 0.0
    %628 = vmatpush1.msra.mxu0 0.0
    %629 = vmatprep.subr.mxu0 0.0
    %630 = vmatpush1.msra.mxu0 0.0
    %631 = vmatprep.subr.mxu0 0.0
    %632 = vmatpush1.msra.mxu0 0.0
    %633 = vmatprep.subr.mxu0 0.0
    %634 = vmatpush1.msra.mxu0 0.0
    %635 = vmatprep.subr.mxu0 0.0
    %636 = vmatpush1.msra.mxu0 0.0
    %637 = vmatprep.subr.mxu0 0.0
    %638 = vmatpush1.msra.mxu0 0.0
    %639 = vmatprep.subr.mxu0 0.0
    %640 = vmatpush1.msra.mxu0 0.0
    %641 = vmatprep.subr.mxu0 0.0
    %642 = vmatpush1.msra.mxu0 0.0
    %643 = vmatprep.subr.mxu0 0.0
    %644 = vmatpush1.msra.mxu0 0.0
    %645 = vmatprep.subr.mxu0 0.0
    %646 = vmatpush1.msra.mxu0 0.0
    %647 = vmatprep.subr.mxu0 0.0
    %648 = vmatpush1.msra.mxu0 0.0
    %649 = vmatprep.subr.mxu0 0.0
    %650 = vmatpush1.msra.mxu0 0.0
    %651 = vmatprep.subr.mxu0 0.0
    %652 = vmatpush1.msra.mxu0 0.0
    %653 = vmatprep.subr.mxu0 0.0
    %654 = vmatpush1.msra.mxu0 0.0
    %655 = vmatprep.subr.mxu0 0.0
    %656 = vmatpush1.msra.mxu0 0.0
    %657 = vmatprep.subr.mxu0 0.0
    %658 = vmatpush1.msra.mxu0 0.0
    %659 = vmatprep.subr.mxu0 0.0
    %660 = vmatpush1.msra.mxu0 0.0
    %661 = vmatprep.subr.mxu0 0.0
    %662 = vmatpush1.msra.mxu0 0.0
    %663 = vmatprep.subr.mxu0 0.0
    %664 = vmatpush1.msra.mxu0 0.0
    %665 = vmatprep.subr.mxu0 0.0
    %666 = vmatpush1.msra.mxu0 0.0
    %667 = vmatprep.subr.mxu0 0.0
    %668 = vmatpush1.msra.mxu0 0.0
    %669 = vmatprep.subr.mxu0 0.0
    %670 = vmatpush1.msra.mxu0 0.0
    %671 = vmatprep.subr.mxu0 0.0
    %672 = vmatpush1.msra.mxu0 0.0
    %673 = vmatprep.subr.mxu0 0.0
    %674 = vmatpush1.msra.mxu0 0.0
    %675 = vmatprep.subr.mxu0 0.0
    %676 = vmatpush1.msra.mxu0 0.0
    %677 = vmatprep.subr.mxu0 0.0
    %678 = vmatpush1.msra.mxu0 0.0
    %679 = vmatprep.subr.mxu0 0.0
    %680 = vmatpush1.msra.mxu0 0.0
    %681 = vmatprep.subr.mxu0 0.0
    %682 = vmatpush1.msra.mxu0 0.0
    %683 = vmatprep.mubr.f32.mxu0 0.0
    %684 = vmatmul.mubr.f32.gmra.mrb[0].mxu0 %v611
    %v685 = vpop.f32.mrb[0].mxu0
    %v686 = vadd.f32 0.0, %v685
    %v687 = vpop.f32.mrb[0].mxu0
    %688 = vmatprep.mubr.f32.mxu0 0.0
    %689 = vmatmul.mubr.f32.gmra.mrb[0].mxu0 %v613
    %v690 = vpop.f32.mrb[0].mxu0
    %v691 = vadd.f32 0.0, %v690
    %v692 = vpop.f32.mrb[0].mxu0
    %693 = vmatprep.mubr.f32.mxu0 0.0
    %694 = vmatmul.mubr.f32.gmra.mrb[0].mxu0 %v615
    %v695 = vpop.f32.mrb[0].mxu0
    %v696 = vadd.f32 0.0, %v695
    %v697 = vpop.f32.mrb[0].mxu0
    %698 = vdwg.mxu0
    %v699 = vadd.f32 %v580, %v686
    %v700 = vadd.f32 %v585, %v691
    %v701 = vsel %vm254, %v590, 0.0
    %v702 = vsel %vm254, %v696, 0.0
    %v703 = vadd.f32 %v701, %v702
    %v704 = vmul.f32 %v699, %v435
    %v705 = vmul.f32 %v700, %v435
    %v706 = vmul.f32 %v703, %v435
    %v707 = vmul.f32 %v580, %v580
    %v708 = vmul.f32 %v585, %v585
    %v709 = vmul.f32 %v590, %v590
    %v710 = vmul.f32 %v686, %v686
    %v711 = vmul.f32 %v691, %v691
    %v712 = vmul.f32 %v696, %v696
    %v713 = vadd.f32 %v707, %v710
    %v714 = vadd.f32 %v708, %v711
    %v715 = vsel %vm254, %v709, 0.0
    %v716 = vsel %vm254, %v712, 0.0
    %v717 = vadd.f32 %v715, %v716
    %v718 = vmul.f32 %v713, %v435
    %v719 = vmul.f32 %v714, %v435
    %v720 = vmul.f32 %v717, %v435
    %v721 = vmul.f32 %v704, %v704
    %v722 = vmul.f32 %v705, %v705
    %v723 = vmul.f32 %v706, %v706
    %v724 = vsub.f32 %v718, %v721
    %v725 = vsub.f32 %v719, %v722
    %v726 = vsub.f32 %v720, %v723
    %v727 = vmax.f32 %v724, 0.0
    %v728 = vmax.f32 %v725, 0.0
    %v729 = vmax.f32 %v726, 0.0
    %v730 = vsub.f32 %v580, %v704
    %v731 = vsub.f32 %v585, %v705
    %v732 = vsub.f32 %v590, %v706
    %v733 = vsub.f32 %v686, %v704
    %v734 = vsub.f32 %v691, %v705
    %v735 = vsub.f32 %v696, %v706
    %v736 = vadd.f32 %v727, 1e-05
    %v737 = vadd.f32 %v728, 1e-05
    %v738 = vadd.f32 %v729, 1e-05
    %v739 = vrsqrt.pop %v736
    %v740 = vrsqrt.pop %v737
    %v741 = vrsqrt.pop %v738
    %v742 = vmul.f32 %v730, %v739
    %v743 = vmul.f32 %v731, %v740
    %v744 = vmul.f32 %v732, %v741
    %v745 = vmul.f32 %v733, %v739
    %v746 = vmul.f32 %v734, %v740
    %v747 = vmul.f32 %v735, %v741
    %v748 = vld [vmem:[%s1 + $0x14] sm:$0xff]
    %v749 = vld [vmem:[%s1 + $0x1c] sm:$0xff]
    %v750 = vld [vmem:[%s1 + $0x24] sm:$0xf]
    %v751 = vld [vmem:[%s1 + $0x3c] sm:$0xff]
    %v752 = vld [vmem:[%s1 + $0x44] sm:$0xff]
    %v753 = vld [vmem:[%s1 + $0x4c] sm:$0xf]
    %757 = vrot.lane.b32.xlu0 %v748, 108
    %v758 = vpop.permute.xlu0 %757
    %759 = vrot.lane.b32.xlu0 %v749, 108
    %v760 = vpop.permute.xlu0 %759
    %761 = vrot.lane.b32.xlu0 %v750, 108
    %v762 = vpop.permute.xlu0 %761
    %v764 = vrot.slane %v120, 4
    %v765 = vrot.slane %v125, 4
    %v766 = vsel %vm254, %v764, %v765
    %v767 = vrot.slane %v130, 4
    %v768 = vsel %vm254, %v765, %v767
    %v771 = vsel %vm244, %v758, 0
    %v773 = vsel %vm244, %v760, 0
    %v775 = vsel %vm244, %v762, 0
    %v777 = vsel %vm254, %v767, 0
    %779 = vmatprep.subr.mxu0 0.0
    %780 = vmatpush1.msra.mxu0 %v766
    %781 = vmatprep.subr.mxu0 0.0
    %782 = vmatpush1.msra.mxu0 %v768
    %783 = vmatprep.subr.mxu0 0.0
    %784 = vmatpush1.msra.mxu0 %v777
    %785 = vmatprep.subr.mxu0 0.0
    %786 = vmatpush1.msra.mxu0 0.0
    %787 = vmatprep.subr.mxu0 0.0
    %788 = vmatpush1.msra.mxu0 0.0
    %789 = vmatprep.subr.mxu0 0.0
    %790 = vmatpush1.msra.mxu0 0.0
    %791 = vmatprep.subr.mxu0 0.0
    %792 = vmatpush1.msra.mxu0 0.0
    %793 = vmatprep.subr.mxu0 0.0
    %794 = vmatpush1.msra.mxu0 0.0
    %795 = vmatprep.subr.mxu0 0.0
    %796 = vmatpush1.msra.mxu0 0.0
    %797 = vmatprep.subr.mxu0 0.0
    %798 = vmatpush1.msra.mxu0 0.0
    %799 = vmatprep.subr.mxu0 0.0
    %800 = vmatpush1.msra.mxu0 0.0
    %801 = vmatprep.subr.mxu0 0.0
    %802 = vmatpush1.msra.mxu0 0.0
    %803 = vmatprep.subr.mxu0 0.0
    %804 = vmatpush1.msra.mxu0 0.0
    %805 = vmatprep.subr.mxu0 0.0
    %806 = vmatpush1.msra.mxu0 0.0
    %807 = vmatprep.subr.mxu0 0.0
    %808 = vmatpush1.msra.mxu0 0.0
    %809 = vmatprep.subr.mxu0 0.0
    %810 = vmatpush1.msra.mxu0 0.0
    %811 = vmatprep.subr.mxu0 0.0
    %812 = vmatpush1.msra.mxu0 0.0
    %813 = vmatprep.subr.mxu0 0.0
    %814 = vmatpush1.msra.mxu0 0.0
    %815 = vmatprep.subr.mxu0 0.0
    %816 = vmatpush1.msra.mxu0 0.0
    %817 = vmatprep.subr.mxu0 0.0
    %818 = vmatpush1.msra.mxu0 0.0
    %819 = vmatprep.subr.mxu0 0.0
    %820 = vmatpush1.msra.mxu0 0.0
    %821 = vmatprep.subr.mxu0 0.0
    %822 = vmatpush1.msra.mxu0 0.0
    %823 = vmatprep.subr.mxu0 0.0
    %824 = vmatpush1.msra.mxu0 0.0
    %825 = vmatprep.subr.mxu0 0.0
    %826 = vmatpush1.msra.mxu0 0.0
    %827 = vmatprep.subr.mxu0 0.0
    %828 = vmatpush1.msra.mxu0 0.0
    %829 = vmatprep.subr.mxu0 0.0
    %830 = vmatpush1.msra.mxu0 0.0
    %831 = vmatprep.subr.mxu0 0.0
    %832 = vmatpush1.msra.mxu0 0.0
    %833 = vmatprep.subr.mxu0 0.0
    %834 = vmatpush1.msra.mxu0 0.0
    %835 = vmatprep.subr.mxu0 0.0
    %836 = vmatpush1.msra.mxu0 0.0
    %837 = vmatprep.subr.mxu0 0.0
    %838 = vmatpush1.msra.mxu0 0.0
    %839 = vmatprep.subr.mxu0 0.0
    %840 = vmatpush1.msra.mxu0 0.0
    %841 = vmatprep.subr.mxu0 0.0
    %842 = vmatpush1.msra.mxu0 0.0
    %843 = vmatprep.mubr.f32.mxu0 0.0
    %844 = vmatmul.mubr.f32.gmra.mrb[0].mxu0 %v771
    %v845 = vpop.f32.mrb[0].mxu0
    %v846 = vadd.f32 0.0, %v845
    %v847 = vpop.f32.mrb[0].mxu0
    %848 = vmatprep.mubr.f32.mxu0 0.0
    %849 = vmatmul.mubr.f32.gmra.mrb[0].mxu0 %v773
    %v850 = vpop.f32.mrb[0].mxu0
    %v851 = vadd.f32 0.0, %v850
    %v852 = vpop.f32.mrb[0].mxu0
    %853 = vmatprep.mubr.f32.mxu0 0.0
    %854 = vmatmul.mubr.f32.gmra.mrb[0].mxu0 %v775
    %v855 = vpop.f32.mrb[0].mxu0
    %v856 = vadd.f32 0.0, %v855
    %v857 = vpop.f32.mrb[0].mxu0
    %858 = vdwg.mxu0
    %862 = vrot.lane.b32.xlu0 %v751, 108
    %v863 = vpop.permute.xlu0 %862
    %864 = vrot.lane.b32.xlu0 %v752, 108
    %v865 = vpop.permute.xlu0 %864
    %866 = vrot.lane.b32.xlu0 %v753, 108
    %v867 = vpop.permute.xlu0 %866
    %v869 = vrot.slane %v225, 4
    %v870 = vrot.slane %v230, 4
    %v871 = vsel %vm254, %v869, %v870
    %v872 = vrot.slane %v235, 4
    %v873 = vsel %vm254, %v870, %v872
    %v876 = vsel %vm244, %v863, 0
    %v878 = vsel %vm244, %v865, 0
    %v880 = vsel %vm244, %v867, 0
    %v882 = vsel %vm254, %v872, 0
    %884 = vmatprep.subr.mxu0 0.0
    %885 = vmatpush1.msra.mxu0 %v871
    %886 = vmatprep.subr.mxu0 0.0
    %887 = vmatpush1.msra.mxu0 %v873
    %888 = vmatprep.subr.mxu0 0.0
    %889 = vmatpush1.msra.mxu0 %v882
    %890 = vmatprep.subr.mxu0 0.0
    %891 = vmatpush1.msra.mxu0 0.0
    %892 = vmatprep.subr.mxu0 0.0
    %893 = vmatpush1.msra.mxu0 0.0
    %894 = vmatprep.subr.mxu0 0.0
    %895 = vmatpush1.msra.mxu0 0.0
    %896 = vmatprep.subr.mxu0 0.0
    %897 = vmatpush1.msra.mxu0 0.0
    %898 = vmatprep.subr.mxu0 0.0
    %899 = vmatpush1.msra.mxu0 0.0
    %900 = vmatprep.subr.mxu0 0.0
    %901 = vmatpush1.msra.mxu0 0.0
    %902 = vmatprep.subr.mxu0 0.0
    %903 = vmatpush1.msra.mxu0 0.0
    %904 = vmatprep.subr.mxu0 0.0
    %905 = vmatpush1.msra.mxu0 0.0
    %906 = vmatprep.subr.mxu0 0.0
    %907 = vmatpush1.msra.mxu0 0.0
    %908 = vmatprep.subr.mxu0 0.0
    %909 = vmatpush1.msra.mxu0 0.0
    %910 = vmatprep.subr.mxu0 0.0
    %911 = vmatpush1.msra.mxu0 0.0
    %912 = vmatprep.subr.mxu0 0.0
    %913 = vmatpush1.msra.mxu0 0.0
    %914 = vmatprep.subr.mxu0 0.0
    %915 = vmatpush1.msra.mxu0 0.0
    %916 = vmatprep.subr.mxu0 0.0
    %917 = vmatpush1.msra.mxu0 0.0
    %918 = vmatprep.subr.mxu0 0.0
    %919 = vmatpush1.msra.mxu0 0.0
    %920 = vmatprep.subr.mxu0 0.0
    %921 = vmatpush1.msra.mxu0 0.0
    %922 = vmatprep.subr.mxu0 0.0
    %923 = vmatpush1.msra.mxu0 0.0
    %924 = vmatprep.subr.mxu0 0.0
    %925 = vmatpush1.msra.mxu0 0.0
    %926 = vmatprep.subr.mxu0 0.0
    %927 = vmatpush1.msra.mxu0 0.0
    %928 = vmatprep.subr.mxu0 0.0
    %929 = vmatpush1.msra.mxu0 0.0
    %930 = vmatprep.subr.mxu0 0.0
    %931 = vmatpush1.msra.mxu0 0.0
    %932 = vmatprep.subr.mxu0 0.0
    %933 = vmatpush1.msra.mxu0 0.0
    %934 = vmatprep.subr.mxu0 0.0
    %935 = vmatpush1.msra.mxu0 0.0
    %936 = vmatprep.subr.mxu0 0.0
    %937 = vmatpush1.msra.mxu0 0.0
    %938 = vmatprep.subr.mxu0 0.0
    %939 = vmatpush1.msra.mxu0 0.0
    %940 = vmatprep.subr.mxu0 0.0
    %941 = vmatpush1.msra.mxu0 0.0
    %942 = vmatprep.subr.mxu0 0.0
    %943 = vmatpush1.msra.mxu0 0.0
    %944 = vmatprep.subr.mxu0 0.0
    %945 = vmatpush1.msra.mxu0 0.0
    %946 = vmatprep.subr.mxu0 0.0
    %947 = vmatpush1.msra.mxu0 0.0
    %948 = vmatprep.mubr.f32.mxu0 0.0
    %949 = vmatmul.mubr.f32.gmra.mrb[0].mxu0 %v876
    %v950 = vpop.f32.mrb[0].mxu0
    %v951 = vadd.f32 0.0, %v950
    %v952 = vpop.f32.mrb[0].mxu0
    %953 = vmatprep.mubr.f32.mxu0 0.0
    %954 = vmatmul.mubr.f32.gmra.mrb[0].mxu0 %v878
    %v955 = vpop.f32.mrb[0].mxu0
    %v956 = vadd.f32 0.0, %v955
    %v957 = vpop.f32.mrb[0].mxu0
    %958 = vmatprep.mubr.f32.mxu0 0.0
    %959 = vmatmul.mubr.f32.gmra.mrb[0].mxu0 %v880
    %v960 = vpop.f32.mrb[0].mxu0
    %v961 = vadd.f32 0.0, %v960
    %v962 = vpop.f32.mrb[0].mxu0
    %963 = vdwg.mxu0
    %v964 = vadd.f32 %v846, %v951
    %v965 = vadd.f32 %v851, %v956
    %v966 = vsel %vm254, %v856, 0.0
    %v967 = vsel %vm254, %v961, 0.0
    %v968 = vadd.f32 %v966, %v967
    %v969 = vmul.f32 %v964, %v435
    %v970 = vmul.f32 %v965, %v435
    %v971 = vmul.f32 %v968, %v435
    %v972 = vmul.f32 %v846, %v846
    %v973 = vmul.f32 %v851, %v851
    %v974 = vmul.f32 %v856, %v856
    %v975 = vmul.f32 %v951, %v951
    %v976 = vmul.f32 %v956, %v956
    %v977 = vmul.f32 %v961, %v961
    %v978 = vadd.f32 %v972, %v975
    %v979 = vadd.f32 %v973, %v976
    %v980 = vsel %vm254, %v974, 0.0
    %v981 = vsel %vm254, %v977, 0.0
    %v982 = vadd.f32 %v980, %v981
    %v983 = vmul.f32 %v978, %v435
    %v984 = vmul.f32 %v979, %v435
    %v985 = vmul.f32 %v982, %v435
    %v986 = vmul.f32 %v969, %v969
    %v987 = vmul.f32 %v970, %v970
    %v988 = vmul.f32 %v971, %v971
    %v989 = vsub.f32 %v983, %v986
    %v990 = vsub.f32 %v984, %v987
    %v991 = vsub.f32 %v985, %v988
    %v992 = vmax.f32 %v989, 0.0
    %v993 = vmax.f32 %v990, 0.0
    %v994 = vmax.f32 %v991, 0.0
    %v995 = vsub.f32 %v846, %v969
    %v996 = vsub.f32 %v851, %v970
    %v997 = vsub.f32 %v856, %v971
    %v998 = vsub.f32 %v951, %v969
    %v999 = vsub.f32 %v956, %v970
    %v1000 = vsub.f32 %v961, %v971
    %v1001 = vadd.f32 %v992, 1e-05
    %v1002 = vadd.f32 %v993, 1e-05
    %v1003 = vadd.f32 %v994, 1e-05
    %v1004 = vrsqrt.pop %v1001
    %v1005 = vrsqrt.pop %v1002
    %v1006 = vrsqrt.pop %v1003
    %v1007 = vmul.f32 %v995, %v1004
    %v1008 = vmul.f32 %v996, %v1005
    %v1009 = vmul.f32 %v997, %v1006
    %v1010 = vmul.f32 %v998, %v1004
    %v1011 = vmul.f32 %v999, %v1005
    %v1012 = vmul.f32 %v1000, %v1006
    %1013 = vst [vmem:[#allocation2] sm:$0xff] %v474
    %1014 = vst [vmem:[#allocation2 + $0x8] sm:$0x3] %v475
    %1015 = vst [vmem:[#allocation2 + $0x28] sm:$0xff] %v477
    %1016 = vst [vmem:[#allocation2 + $0x30] sm:$0x3] %v478
    %vm1021 = vcmask 1041408
    %v1022 = vrot.slane %v742, 6
    %v1023 = vrot.slane %v743, 6
    %v1024 = vsel %vm1021, %v1022, %v1023
    %v1025 = vrot.slane %v745, 6
    %v1026 = vrot.slane %v746, 6
    %v1027 = vsel %vm1021, %v1025, %v1026
    %v1032 = vadd.f32 %v475, %v1022
    %v1033 = vadd.f32 %v476, %v1024
    %v1034 = vadd.f32 %v478, %v1025
    %v1035 = vadd.f32 %v479, %v1027
    %v1036 = vmul.f32 %v1032, 0.5
    %v1037 = vmul.f32 %v1033, 0.5
    %v1038 = vmul.f32 %v1034, 0.5
    %v1039 = vmul.f32 %v1035, 0.5
    %1040 = vst [vmem:[#allocation2 + $0x8] sm:$0xfc] %v1036
    %1041 = vst [vmem:[#allocation2 + $0x10] sm:$0xf] %v1037
    %1042 = vst [vmem:[#allocation2 + $0x30] sm:$0xfc] %v1038
    %1043 = vst [vmem:[#allocation2 + $0x38] sm:$0xf] %v1039
    %v1048 = vrot.slane %v1007, 6
    %v1049 = vrot.slane %v1008, 6
    %v1050 = vsel %vm1021, %v1048, %v1049
    %v1051 = vrot.slane %v1010, 6
    %v1052 = vrot.slane %v1011, 6
    %v1053 = vsel %vm1021, %v1051, %v1052
    %v1058 = vadd.f32 %v743, %v1048
    %v1059 = vadd.f32 %v744, %v1050
    %v1060 = vadd.f32 %v746, %v1051
    %v1061 = vadd.f32 %v747, %v1053
    %v1062 = vmul.f32 %v1058, 0.5
    %v1063 = vmul.f32 %v1059, 0.5
    %v1064 = vmul.f32 %v1060, 0.5
    %v1065 = vmul.f32 %v1061, 0.5
    %1066 = vst [vmem:[#allocation2 + $0x12] sm:$0xfc] %v1062
    %1067 = vst [vmem:[#allocation2 + $0x1a] sm:$0xf] %v1063
    %1068 = vst [vmem:[#allocation2 + $0x3a] sm:$0xfc] %v1064
    %1069 = vst [vmem:[#allocation2 + $0x42] sm:$0xf] %v1065
    %1070 = vst [vmem:[#allocation2 + $0x1c] sm:$0xfc] %v1008
    %1071 = vst [vmem:[#allocation2 + $0x24] sm:$0xf] %v1009
    %1072 = vst [vmem:[#allocation2 + $0x44] sm:$0xfc] %v1011
    %1073 = vst [vmem:[#allocation2 + $0x4c] sm:$0xf] %v1012
    // Predicated region
    $region14: #{tpu_custom_call.1} parent=1 // pred_check
      _
    $region15: #{tpu_custom_call.1} parent=1 // pred_check_branch
      %1075 = sbr.rel (0) target = $region17
    $region16: #{tpu_custom_call.1} parent=1 // pred_region
      %s1077 = ssub.s32 1280, 1280
      %1078 = vsyncadd [#allocation3], %s1077
      %s1079 = sshll.u32 [#allocation2], 4
      %s1080 = int_to_ptr.vmem [resolvable:$true] %s1079
      %1085 = dma.vmem_to_hbm [thread:$0]  %s1080, 1280, %s3, [#allocation3], 128, 128, 8
    $region17: #{tpu_custom_call.1} parent=1 // pred_fallthru
      _
    // Predicated region
    $region18: #{tpu_custom_call.1} parent=1 // pred_check
      _
    $region19: #{tpu_custom_call.1} parent=1 // pred_check_branch
      %1087 = sbr.rel (0) target = $region21
    $region20: #{tpu_custom_call.1} parent=1 // pred_region
      %1088 = dma.done [#allocation3], 1280
    $region21: #{tpu_custom_call.1} parent=1 // pred_fallthru
      _
    %1089 = vsyncpa [#allocation3], 1

</llo_original>
